<compile_context>
chip_gen: v6e
topology: v6e:2x2x1
jax: 0.10.0
libtpu: 0.0.40
codegen_flags: <defaults>
</compile_context>

<pallas_src>
import functools

import jax
import jax.numpy as jnp
from jax.experimental import pallas as pl
from jax.experimental.pallas import tpu as pltpu

_LANE = 128


def _round_up(x, m):
    return ((x + m - 1) // m) * m


# ----------------------------------------------------------------------------
# Fused kernel: folded linear chain (+ optional CE partial sum per tile)
# ----------------------------------------------------------------------------
def _make_fused_kernel(n_layers, num_classes, hw, with_loss, tile_b, true_b,
                       ragged):
    def kernel(*refs):
        idx = 0
        x_ref = refs[idx]; idx += 1
        y_ref = None
        if with_loss:
            y_ref = refs[idx]; idx += 1
        wb = refs[idx:idx + 2 * n_layers]; idx += 2 * n_layers
        out_ref = refs[idx]; idx += 1
        loss_ref = refs[idx] if with_loss else None

        # ---- folded linear chain, activations stay in VMEM/vregs ----
        h = x_ref[...]
        for l in range(n_layers):
            w = wb[2 * l][...]
            b = wb[2 * l + 1][...]
            h = jnp.dot(h, w, preferred_element_type=jnp.float32) + b
        out_ref[...] = h

        # ---- cross entropy over channel axis, contiguous-slab formulation ----
        if with_loss:
            labels = y_ref[...].astype(jnp.int32)                # int8 in HBM
            slabs = [h[:, c * hw:(c + 1) * hw] for c in range(num_classes)]
            m = slabs[0]
            for c in range(1, num_classes):
                m = jnp.maximum(m, slabs[c])
            denom = jnp.zeros_like(m)
            for c in range(num_classes):
                denom = denom + jnp.exp(slabs[c] - m)
            lse = m + jnp.log(denom)                             # (tile_b, hw)
            picked = jnp.zeros_like(m)
            for c in range(num_classes):
                picked = picked + jnp.where(labels == c, slabs[c], 0.0)
            per_elem = lse - picked
            if ragged:
                # Mask rows that belong to the zero-padded batch tail.
                grow = (pl.program_id(0) * tile_b
                        + jax.lax.broadcasted_iota(jnp.int32, (tile_b, hw), 0))
                per_elem = jnp.where(grow < true_b, per_elem, 0.0)
            partial = jnp.sum(per_elem)                          # scalar partial
            # Lane-dense (8,128) block; value at [0,0], rest zero, so a plain
            # sum in the wrapper recovers it.  Megacore-safe (per-tile block).
            row = jax.lax.broadcasted_iota(jnp.int32, (8, _LANE), 0)
            col = jax.lax.broadcasted_iota(jnp.int32, (8, _LANE), 1)
            loss_ref[...] = jnp.where((row == 0) & (col == 0), partial, 0.0)

    return kernel


# ----------------------------------------------------------------------------
# Hardware-aware, VMEM-budget-driven batch tiling
# ----------------------------------------------------------------------------
def _pick_tiling(B, d_pad, hw, with_loss, resident_bytes):
    try:
        kind = jax.devices()[0].device_kind.lower()
    except Exception:
        kind = ""
    is_v7x = ("v7" in kind) or ("7x" in kind)

    hard_cap = 1024 if is_v7x else 2048
    vmem_limit = (48 if is_v7x else 80) * 1024 * 1024

    # Per-row VMEM bytes: double-buffered input/output slabs (+ int8 labels),
    # plus live intermediate activation and CE temporaries.
    row_bytes = 2 * (4 * d_pad + 4 * d_pad)          # pipelined x / decoded
    row_bytes += 4 * d_pad                           # live activation copy
    if with_loss:
        row_bytes += 2 * hw                          # int8 labels, pipelined
        row_bytes += 6 * 4 * hw                      # CE temporaries (est.)

    budget = vmem_limit - resident_bytes - (4 << 20)  # headroom
    cap = (max(budget, 0) // max(row_bytes, 1)) // 256 * 256
    cap = max(256, min(hard_cap, cap))

    if B <= cap:
        half = B // 2
        if B % 2 == 0 and half >= 256 and half % 256 == 0:
            tile_b = half            # >=2 grid steps -> both v7x TCs busy
        else:
            tile_b = B               # single tile == full array dim (legal)
        b_pad = B
    else:
        tile_b = cap
        b_pad = _round_up(B, tile_b)
    return tile_b, b_pad, vmem_limit


# ----------------------------------------------------------------------------
# Forward pass wrapper
# ----------------------------------------------------------------------------
def autoencoder_forward(X, y, params, input_dims):
    """params: folded + zero-padded (w, b) pairs, w stored (in, out)."""
    B = X.shape[0]
    C = input_dims[0]
    hw = 1
    for d in input_dims[1:]:
        hw *= d
    D = C * hw
    D_pad = params[0][0].shape[0]            # padded fan-in of the first layer
    with_loss = y is not None

    resident = 2 * sum(4 * (w.size + b.size) for (w, b) in params)
    tile_b, B_pad, vmem_limit = _pick_tiling(B, D_pad, hw, with_loss, resident)
    num_tiles = B_pad // tile_b
    ragged = B_pad != B

    # nn.Flatten(1) on NCHW, then lane/batch padding (exact: padded cols are 0,
    # padded rows are masked out of the loss and sliced off the output).
    x2d = X.reshape(B, D).astype(jnp.float32)
    if D_pad != D:
        x2d = jnp.pad(x2d, ((0, 0), (0, D_pad - D)))
    if ragged:
        x2d = jnp.pad(x2d, ((0, B_pad - B), (0, 0)))

    n_layers = len(params)
    inputs = [x2d]
    in_specs = [pl.BlockSpec((tile_b, D_pad), lambda i: (i, 0))]
    if with_loss:
        labels2d = y.reshape(B, hw).astype(jnp.int8)      # classes fit in int8
        if ragged:
            labels2d = jnp.pad(labels2d, ((0, B_pad - B), (0, 0)))
        inputs.append(labels2d)
        in_specs.append(pl.BlockSpec((tile_b, hw), lambda i: (i, 0)))
    for (w, b) in params:
        inputs += [w, b]
        in_specs += [pl.BlockSpec(w.shape, lambda i: (0, 0)),   # VMEM-resident
                     pl.BlockSpec(b.shape, lambda i: (0, 0))]

    dec_shape = jax.ShapeDtypeStruct((B_pad, D_pad), jnp.float32)
    dec_spec = pl.BlockSpec((tile_b, D_pad), lambda i: (i, 0))
    if with_loss:
        out_shape = (dec_shape,
                     jax.ShapeDtypeStruct((num_tiles * 8, _LANE), jnp.float32))
        out_specs = (dec_spec, pl.BlockSpec((8, _LANE), lambda i: (i, 0)))
    else:
        out_shape = dec_shape
        out_specs = dec_spec

    flops = 2 * B_pad * sum(w.shape[0] * w.shape[1] for (w, _) in params)
    transcendentals = B_pad * hw * (C + 1) if with_loss else 0
    bytes_accessed = 4 * (x2d.size + B_pad * D_pad) \
        + 4 * sum(w.size + b.size for (w, b) in params)
    if with_loss:
        bytes_accessed += B_pad * hw + 4 * num_tiles * 8 * _LANE

    kernel = _make_fused_kernel(n_layers, C, hw, with_loss, tile_b, B, ragged)
    result = pl.pallas_call(
        kernel,
        grid=(num_tiles,),
        in_specs=in_specs,
        out_specs=out_specs,
        out_shape=out_shape,
        compiler_params=pltpu.CompilerParams(
            dimension_semantics=("parallel",),
            vmem_limit_bytes=vmem_limit,
        ),
        cost_estimate=pl.CostEstimate(
            flops=flops,
            transcendentals=transcendentals,
            bytes_accessed=bytes_accessed,
        ),
    )(*inputs)

    if with_loss:
        decoded, loss_parts = result
        loss = jnp.sum(loss_parts) / (B * hw)     # CrossEntropyLoss mean
    else:
        decoded = result
        loss = None

    X_out = decoded[:B, :D].reshape((B,) + tuple(input_dims))   # nn.Unflatten
    return X_out, loss


# ----------------------------------------------------------------------------
# Parameter construction (mirrors nn.Linear init) + exact fold + zero-padding
# ----------------------------------------------------------------------------
def init_params(key, input_dims, layer_sizes):
    input_size = 1
    for d in input_dims:
        input_size *= d
    enc = [(input_size, layer_sizes[0])]
    for i in range(len(layer_sizes) - 1):
        enc.append((layer_sizes[i], layer_sizes[i + 1]))
    dec = [(layer_sizes[i + 1], layer_sizes[i])
           for i in range(len(layer_sizes) - 1)][::-1]
    dec.append((layer_sizes[0], input_size))

    params = []
    for (fan_in, fan_out) in enc + dec:
        key, kw, kb = jax.random.split(key, 3)
        bound = 1.0 / float(fan_in) ** 0.5
        w = jax.random.uniform(kw, (fan_in, fan_out), jnp.float32, -bound, bound)
        b = jax.random.uniform(kb, (1, fan_out), jnp.float32, -bound, bound)
        params.append((w, b))
    return params


def _fold_chain(chain):
    """Fold a stack of Linear layers into one (exact: the chain is affine)."""
    w, b = chain[0]
    for (w2, b2) in chain[1:]:
        b = jnp.dot(b, w2, precision=jax.lax.Precision.HIGHEST) + b2
        w = jnp.dot(w, w2, precision=jax.lax.Precision.HIGHEST)
    return w, b


def fold_and_pad_params(params, num_encoder_layers):
    """Fold encoder / decoder stacks around the bottleneck, then zero-pad every
    resulting Linear to lane-aligned (in, out).  Padding is exact (zeros)."""
    folded = [_fold_chain(params[:num_encoder_layers]),
              _fold_chain(params[num_encoder_layers:])]
    padded = []
    for (w, b) in folded:
        fi, fo = w.shape
        fi_p, fo_p = _round_up(fi, _LANE), _round_up(fo, _LANE)
        w_p = jnp.zeros((fi_p, fo_p), jnp.float32).at[:fi, :fo].set(w)
        b_p = jnp.zeros((1, fo_p), jnp.float32).at[:, :fo].set(b)
        padded.append((w_p, b_p))
    return padded


# ----------------------------------------------------------------------------
# Pure-JAX reference (unfolded, unpadded params) for the sanity check
# ----------------------------------------------------------------------------
def reference_forward(X, y, params, input_dims):
    B = X.shape[0]
    h = X.reshape(B, -1).astype(jnp.float32)
    for (w, b) in params:
        h = jnp.dot(h, w, precision=jax.lax.Precision.HIGHEST) + b
    X_out = h.reshape((B,) + tuple(input_dims))
    loss = None
    if y is not None:
        C = input_dims[0]
        logits = jnp.transpose(X_out.reshape(B, C, -1), (0, 2, 1)).reshape(-1, C)
        lab = y.reshape(-1)
        lse = jax.scipy.special.logsumexp(logits, axis=-1)
        picked = jnp.take_along_axis(logits, lab[:, None], axis=-1)[:, 0]
        loss = jnp.mean(lse - picked)
    return X_out, loss


# ----------------------------------------------------------------------------
if __name__ == "__main__":
    input_dims = (4, 16, 16)        # (C, H, W)
    layer_sizes = [32, 16]
    batch = 2

    key = jax.random.PRNGKey(0)
    kx, ky, kp = jax.random.split(key, 3)
    X = jax.random.normal(kx, (batch,) + input_dims, jnp.float32)
    y = jax.random.randint(ky, (batch,) + input_dims[1:], 0, input_dims[0],
                           jnp.int32)

    params = init_params(kp, input_dims, layer_sizes)
    fused_params = fold_and_pad_params(params, len(layer_sizes))

    fwd = jax.jit(functools.partial(autoencoder_forward,
                                    params=fused_params,
                                    input_dims=input_dims))
    X_out, loss = fwd(X, y)
    jax.block_until_ready((X_out, loss))

    X_ref, loss_ref = reference_forward(X, y, params, input_dims)
    assert X_out.shape == (batch,) + input_dims
    assert jnp.allclose(X_out, X_ref, atol=1e-4, rtol=1e-4)
    assert jnp.allclose(loss, loss_ref, atol=1e-4, rtol=1e-4)

    # y=None path (module returns (X, None))
    fwd_noloss = jax.jit(functools.partial(autoencoder_forward, y=None,
                                           params=fused_params,
                                           input_dims=input_dims))
    X_only, loss_none = fwd_noloss(X)
    jax.block_until_ready(X_only)
    assert loss_none is None
    assert jnp.allclose(X_only, X_ref, atol=1e-4, rtol=1e-4)

    print("KERNEL_OK")
</pallas_src>

<mosaic_0001>
module attributes {stable_mosaic.version = 11 : i64} {
  func.func @kernel(%arg0: i32, %arg1: memref<2x1024xf32, #tpu.memory_space<vmem>>, %arg2: memref<2x256xi8, #tpu.memory_space<vmem>>, %arg3: memref<1024x128xf32, #tpu.memory_space<vmem>>, %arg4: memref<1x128xf32, #tpu.memory_space<vmem>>, %arg5: memref<128x1024xf32, #tpu.memory_space<vmem>>, %arg6: memref<1x1024xf32, #tpu.memory_space<vmem>>, %arg7: memref<2x1024xf32, #tpu.memory_space<vmem>>, %arg8: memref<8x128xf32, #tpu.memory_space<vmem>>) attributes {dimension_semantics = [#tpu.dimension_semantics<parallel>], iteration_bounds = array<i64: 1>, scalar_prefetch = 0 : i64, scratch_operands = 0 : i64, tpu.core_type = #tpu.core_type<tc>, window_params = [{transform_indices = @transform_0, window_bounds = array<i64: 2, 1024>}, {transform_indices = @transform_1, window_bounds = array<i64: 2, 256>}, {pipeline_mode = #tpu.pipeline_mode<synchronous>, transform_indices = @transform_2, window_bounds = array<i64: 1024, 128>}, {pipeline_mode = #tpu.pipeline_mode<synchronous>, transform_indices = @transform_3, window_bounds = array<i64: 1, 128>}, {pipeline_mode = #tpu.pipeline_mode<synchronous>, transform_indices = @transform_4, window_bounds = array<i64: 128, 1024>}, {pipeline_mode = #tpu.pipeline_mode<synchronous>, transform_indices = @transform_5, window_bounds = array<i64: 1, 1024>}, {transform_indices = @transform_6, window_bounds = array<i64: 2, 1024>}, {transform_indices = @transform_7, window_bounds = array<i64: 8, 128>}]} {
    %c0 = arith.constant 0 : index
    %c0_0 = arith.constant 0 : index
    %0 = vector.load %arg1[%c0, %c0_0] : memref<2x1024xf32, #tpu.memory_space<vmem>>, vector<2x1024xf32>
    %c0_1 = arith.constant 0 : index
    %c0_2 = arith.constant 0 : index
    %1 = vector.load %arg3[%c0_1, %c0_2] : memref<1024x128xf32, #tpu.memory_space<vmem>>, vector<1024x128xf32>
    %c0_3 = arith.constant 0 : index
    %c0_4 = arith.constant 0 : index
    %2 = vector.load %arg4[%c0_3, %c0_4] : memref<1x128xf32, #tpu.memory_space<vmem>>, vector<1x128xf32>
    %cst = arith.constant dense<0.000000e+00> : vector<2x128xf32>
    %3 = tpu.matmul %0, %1, %cst {dimension_numbers = #tpu.dot_dimension_numbers<[1], [0], [0], [1], [0, 0, 1, 1], [], []>} : vector<2x1024xf32>, vector<1024x128xf32>, vector<2x128xf32> -> vector<2x128xf32>
    %4 = vector.broadcast %2 : vector<1x128xf32> to vector<2x128xf32>
    %5 = arith.addf %3, %4 : vector<2x128xf32>
    %c0_5 = arith.constant 0 : index
    %c0_6 = arith.constant 0 : index
    %6 = vector.load %arg5[%c0_5, %c0_6] : memref<128x1024xf32, #tpu.memory_space<vmem>>, vector<128x1024xf32>
    %c0_7 = arith.constant 0 : index
    %c0_8 = arith.constant 0 : index
    %7 = vector.load %arg6[%c0_7, %c0_8] : memref<1x1024xf32, #tpu.memory_space<vmem>>, vector<1x1024xf32>
    %cst_9 = arith.constant dense<0.000000e+00> : vector<2x1024xf32>
    %8 = tpu.matmul %5, %6, %cst_9 {dimension_numbers = #tpu.dot_dimension_numbers<[1], [0], [0], [1], [0, 0, 1, 1], [], []>} : vector<2x128xf32>, vector<128x1024xf32>, vector<2x1024xf32> -> vector<2x1024xf32>
    %9 = vector.broadcast %7 : vector<1x1024xf32> to vector<2x1024xf32>
    %10 = arith.addf %8, %9 : vector<2x1024xf32>
    %c0_10 = arith.constant 0 : index
    %c0_11 = arith.constant 0 : index
    %11 = vector.load %arg7[%c0_10, %c0_11] : memref<2x1024xf32, #tpu.memory_space<vmem>>, vector<2x1024xf32>
    tpu.vector_store %arg7[%c0_10, %c0_11], %10 {strides = array<i32>} : memref<2x1024xf32, #tpu.memory_space<vmem>>, vector<2x1024xf32>,
    %c0_12 = arith.constant 0 : index
    %c0_13 = arith.constant 0 : index
    %12 = vector.load %arg2[%c0_12, %c0_13] : memref<2x256xi8, #tpu.memory_space<vmem>>, vector<2x256xi8>
    %13 = arith.extsi %12 : vector<2x256xi8> to vector<2x256xi32>
    %14 = vector.extract_strided_slice %10 {offsets = [0, 0], sizes = [2, 256], strides = [1, 1]} : vector<2x1024xf32> to vector<2x256xf32>
    %15 = vector.extract_strided_slice %10 {offsets = [0, 256], sizes = [2, 256], strides = [1, 1]} : vector<2x1024xf32> to vector<2x256xf32>
    %16 = vector.extract_strided_slice %10 {offsets = [0, 512], sizes = [2, 256], strides = [1, 1]} : vector<2x1024xf32> to vector<2x256xf32>
    %17 = vector.extract_strided_slice %10 {offsets = [0, 768], sizes = [2, 256], strides = [1, 1]} : vector<2x1024xf32> to vector<2x256xf32>
    %18 = arith.maximumf %14, %15 : vector<2x256xf32>
    %19 = arith.maximumf %18, %16 : vector<2x256xf32>
    %20 = arith.maximumf %19, %17 : vector<2x256xf32>
    %cst_14 = arith.constant 0.000000e+00 : f32
    %21 = vector.broadcast %cst_14 : f32 to vector<2x256xf32>
    %22 = arith.subf %14, %20 : vector<2x256xf32>
    %23 = math.exp %22 : vector<2x256xf32>
    %24 = arith.addf %21, %23 : vector<2x256xf32>
    %25 = arith.subf %15, %20 : vector<2x256xf32>
    %26 = math.exp %25 : vector<2x256xf32>
    %27 = arith.addf %24, %26 : vector<2x256xf32>
    %28 = arith.subf %16, %20 : vector<2x256xf32>
    %29 = math.exp %28 : vector<2x256xf32>
    %30 = arith.addf %27, %29 : vector<2x256xf32>
    %31 = arith.subf %17, %20 : vector<2x256xf32>
    %32 = math.exp %31 : vector<2x256xf32>
    %33 = arith.addf %30, %32 : vector<2x256xf32>
    %34 = math.log %33 : vector<2x256xf32>
    %35 = arith.addf %20, %34 : vector<2x256xf32>
    %cst_15 = arith.constant 0.000000e+00 : f32
    %36 = vector.broadcast %cst_15 : f32 to vector<2x256xf32>
    %c0_i32 = arith.constant 0 : i32
    %37 = vector.broadcast %c0_i32 : i32 to vector<2x256xi32>
    %38 = arith.cmpi eq, %13, %37 : vector<2x256xi32>
    %cst_16 = arith.constant 0.000000e+00 : f32
    %39 = vector.broadcast %cst_16 : f32 to vector<2x256xf32>
    %40 = arith.select %38, %14, %39 : vector<2x256xi1>, vector<2x256xf32>
    %41 = arith.addf %36, %40 : vector<2x256xf32>
    %c1_i32 = arith.constant 1 : i32
    %42 = vector.broadcast %c1_i32 : i32 to vector<2x256xi32>
    %43 = arith.cmpi eq, %13, %42 : vector<2x256xi32>
    %cst_17 = arith.constant 0.000000e+00 : f32
    %44 = vector.broadcast %cst_17 : f32 to vector<2x256xf32>
    %45 = arith.select %43, %15, %44 : vector<2x256xi1>, vector<2x256xf32>
    %46 = arith.addf %41, %45 : vector<2x256xf32>
    %c2_i32 = arith.constant 2 : i32
    %47 = vector.broadcast %c2_i32 : i32 to vector<2x256xi32>
    %48 = arith.cmpi eq, %13, %47 : vector<2x256xi32>
    %cst_18 = arith.constant 0.000000e+00 : f32
    %49 = vector.broadcast %cst_18 : f32 to vector<2x256xf32>
    %50 = arith.select %48, %16, %49 : vector<2x256xi1>, vector<2x256xf32>
    %51 = arith.addf %46, %50 : vector<2x256xf32>
    %c3_i32 = arith.constant 3 : i32
    %52 = vector.broadcast %c3_i32 : i32 to vector<2x256xi32>
    %53 = arith.cmpi eq, %13, %52 : vector<2x256xi32>
    %cst_19 = arith.constant 0.000000e+00 : f32
    %54 = vector.broadcast %cst_19 : f32 to vector<2x256xf32>
    %55 = arith.select %53, %17, %54 : vector<2x256xi1>, vector<2x256xf32>
    %56 = arith.addf %51, %55 : vector<2x256xf32>
    %57 = arith.subf %35, %56 : vector<2x256xf32>
    %58 = vector.shape_cast %57 : vector<2x256xf32> to vector<1x2x256xf32>
    %cst_20 = arith.constant dense<0.000000e+00> : vector<1xf32>
    %59 = vector.multi_reduction <add>, %58, %cst_20 [1, 2] : vector<1x2x256xf32> to vector<1xf32>
    %60 = vector.shape_cast %59 : vector<1xf32> to vector<1x1x1xf32>
    %61 = vector.extract %60[0, 0, 0] : f32 from vector<1x1x1xf32>
    %62 = tpu.iota {dimensions = array<i32: 0>} : vector<8x128xi32>
    %63 = tpu.iota {dimensions = array<i32: 1>} : vector<8x128xi32>
    %c0_i32_21 = arith.constant 0 : i32
    %64 = vector.broadcast %c0_i32_21 : i32 to vector<8x128xi32>
    %65 = arith.cmpi eq, %62, %64 : vector<8x128xi32>
    %c0_i32_22 = arith.constant 0 : i32
    %66 = vector.broadcast %c0_i32_22 : i32 to vector<8x128xi32>
    %67 = arith.cmpi eq, %63, %66 : vector<8x128xi32>
    %68 = arith.andi %65, %67 : vector<8x128xi1>
    %cst_23 = arith.constant 0.000000e+00 : f32
    %69 = vector.broadcast %61 : f32 to vector<8x128xf32>
    %70 = vector.broadcast %cst_23 : f32 to vector<8x128xf32>
    %71 = arith.select %68, %69, %70 : vector<8x128xi1>, vector<8x128xf32>
    %c0_24 = arith.constant 0 : index
    %c0_25 = arith.constant 0 : index
    %72 = vector.load %arg8[%c0_24, %c0_25] : memref<8x128xf32, #tpu.memory_space<vmem>>, vector<8x128xf32>
    tpu.vector_store %arg8[%c0_24, %c0_25], %71 {strides = array<i32>} : memref<8x128xf32, #tpu.memory_space<vmem>>, vector<8x128xf32>,
    return
  }
  func.func @transform_0(%arg0: i32) -> (i32, i32) {
    %c0_i32 = arith.constant 0 : i32
    %c0_i32_0 = arith.constant 0 : i32
    return %arg0, %c0_i32 : i32, i32
  }
  func.func @transform_1(%arg0: i32) -> (i32, i32) {
    %c0_i32 = arith.constant 0 : i32
    %c0_i32_0 = arith.constant 0 : i32
    return %arg0, %c0_i32 : i32, i32
  }
  func.func @transform_2(%arg0: i32) -> (i32, i32) {
    %c0_i32 = arith.constant 0 : i32
    %c0_i32_0 = arith.constant 0 : i32
    %c0_i32_1 = arith.constant 0 : i32
    return %c0_i32, %c0_i32_0 : i32, i32
  }
  func.func @transform_3(%arg0: i32) -> (i32, i32) {
    %c0_i32 = arith.constant 0 : i32
    %c0_i32_0 = arith.constant 0 : i32
    %c0_i32_1 = arith.constant 0 : i32
    return %c0_i32, %c0_i32_0 : i32, i32
  }
  func.func @transform_4(%arg0: i32) -> (i32, i32) {
    %c0_i32 = arith.constant 0 : i32
    %c0_i32_0 = arith.constant 0 : i32
    %c0_i32_1 = arith.constant 0 : i32
    return %c0_i32, %c0_i32_0 : i32, i32
  }
  func.func @transform_5(%arg0: i32) -> (i32, i32) {
    %c0_i32 = arith.constant 0 : i32
    %c0_i32_0 = arith.constant 0 : i32
    %c0_i32_1 = arith.constant 0 : i32
    return %c0_i32, %c0_i32_0 : i32, i32
  }
  func.func @transform_6(%arg0: i32) -> (i32, i32) {
    %c0_i32 = arith.constant 0 : i32
    %c0_i32_0 = arith.constant 0 : i32
    return %arg0, %c0_i32 : i32, i32
  }
  func.func @transform_7(%arg0: i32) -> (i32, i32) {
    %c0_i32 = arith.constant 0 : i32
    %c0_i32_0 = arith.constant 0 : i32
    return %arg0, %c0_i32 : i32, i32
  }
}

</mosaic_0001>

<llo_original>
// kernel: autoencoder_forward.1
$region0: #{autoencoder_forward.1}
  #allocation0 [shape = 'u32[]', space=smem, size = 0x4, offset = 0x4, fixed_abs, tag = 'smem constant byte address 0x4 - core index']
  #allocation1 [shape = 'u32[144,128]{1,0:T(1,128)}', space=vmem, size = 0x12000, scoped, tag = 'internal scratch']
  %s0 = inlined_call_operand.vmem [shape: f32[2,1024], index: 0, kind: input, shape index: {}]
  %s1 = inlined_call_operand.vmem [shape: s8[2,256], index: 1, kind: input, shape index: {}]
  %s2 = inlined_call_operand.hbm [shape: f32[1024,128], index: 2, kind: input, shape index: {}]
  %s3 = inlined_call_operand.vmem [shape: f32[1,128], index: 3, kind: input, shape index: {}]
  %s4 = inlined_call_operand.hbm [shape: f32[128,1024], index: 4, kind: input, shape index: {}]
  %s5 = inlined_call_operand.vmem [shape: f32[1,1024], index: 5, kind: input, shape index: {}]
  %s6 = inlined_call_operand.vmem [shape: f32[2,1024], index: 6, kind: output, shape index: {0}]
  %s7 = inlined_call_operand.vmem [shape: f32[8,128], index: 7, kind: output, shape index: {1}]
  %8 = xla_tuple %s6, %s7
  %s9 = sld [smem:[#allocation0]]
  $region50: #{autoencoder_forward.1} parent=0
    _
  %s11 = ssub.s32 1, %s9
  %s12 = scalar_select 0, %s11, %s9
  $region1: #{autoencoder_forward.1} parent=0
    #allocation2 [shape = 'u8[524288]{0}', space=vmem, size = 0x80000, scoped, tag = 'input window, operand 2, single buffered']
    #allocation3 [shape = 's32[1]{0}', space=sflag, size = 0x4, scoped, tag = 'scoped memory for autoencoder_forward.1']
    #allocation4 [shape = 'u8[524288]{0}', space=vmem, size = 0x80000, scoped, tag = 'input window, operand 4, single buffered']
    #allocation5 [shape = 's32[1]{0}', space=sflag, size = 0x4, scoped, tag = 'scoped memory for autoencoder_forward.1']
    %13 = vsyncpa [#allocation3], 0
    %14 = vsyncpa [#allocation5], 0
    // Predicated region
    $region2: #{autoencoder_forward.1} parent=1 // pred_check
      _
    $region3: #{autoencoder_forward.1} parent=1 // pred_check_branch
      %16 = sbr.rel (0) target = $region5
    $region4: #{autoencoder_forward.1} parent=1 // pred_region
      _
    $region5: #{autoencoder_forward.1} parent=1 // pred_fallthru
      _
    // Predicated region
    $region6: #{autoencoder_forward.1} parent=1 // pred_check
      _
    $region7: #{autoencoder_forward.1} parent=1 // pred_check_branch
      %18 = sbr.rel (0) target = $region9
    $region8: #{autoencoder_forward.1} parent=1 // pred_region
      _
    $region9: #{autoencoder_forward.1} parent=1 // pred_fallthru
      _
    // Predicated region
    $region10: #{autoencoder_forward.1} parent=1 // pred_check
      _
    $region11: #{autoencoder_forward.1} parent=1 // pred_check_branch
      %20 = sbr.rel (0) target = $region13
    $region12: #{autoencoder_forward.1} parent=1 // pred_region
      %s22 = ssub.s32 16384, 16384
      %23 = vsyncadd [#allocation3], %s22
      %s24 = sshll.u32 [#allocation2], 4
      %s25 = int_to_ptr.vmem [resolvable:$true] %s24
      %30 = dma.hbm_to_vmem [thread:$0]  %s2, 16384, %s25, [#allocation3], 128, 128, 8
    $region13: #{autoencoder_forward.1} parent=1 // pred_fallthru
      _
    // Predicated region
    $region14: #{autoencoder_forward.1} parent=1 // pred_check
      _
    $region15: #{autoencoder_forward.1} parent=1 // pred_check_branch
      %32 = sbr.rel (0) target = $region17
    $region16: #{autoencoder_forward.1} parent=1 // pred_region
      _
    $region17: #{autoencoder_forward.1} parent=1 // pred_fallthru
      _
    // Predicated region
    $region18: #{autoencoder_forward.1} parent=1 // pred_check
      _
    $region19: #{autoencoder_forward.1} parent=1 // pred_check_branch
      %34 = sbr.rel (0) target = $region21
    $region20: #{autoencoder_forward.1} parent=1 // pred_region
      %s36 = ssub.s32 16384, 16384
      %37 = vsyncadd [#allocation5], %s36
      %s38 = sshll.u32 [#allocation4], 4
      %s39 = int_to_ptr.vmem [resolvable:$true] %s38
      %44 = dma.hbm_to_vmem [thread:$0]  %s4, 16384, %s39, [#allocation5], 1024, 1024, 64
    $region21: #{autoencoder_forward.1} parent=1 // pred_fallthru
      _
    // Predicated region
    $region22: #{autoencoder_forward.1} parent=1 // pred_check
      _
    $region23: #{autoencoder_forward.1} parent=1 // pred_check_branch
      %46 = sbr.rel (0) target = $region25
    $region24: #{autoencoder_forward.1} parent=1 // pred_region
      _
    $region25: #{autoencoder_forward.1} parent=1 // pred_fallthru
      _
    // Predicated region
    $region26: #{autoencoder_forward.1} parent=1 // pred_check
      _
    $region27: #{autoencoder_forward.1} parent=1 // pred_check_branch
      %48 = sbr.rel (0) target = $region29
    $region28: #{autoencoder_forward.1} parent=1 // pred_region
      %49 = dma.done [#allocation3], 16384
    $region29: #{autoencoder_forward.1} parent=1 // pred_fallthru
      _
    // Predicated region
    $region30: #{autoencoder_forward.1} parent=1 // pred_check
      _
    $region31: #{autoencoder_forward.1} parent=1 // pred_check_branch
      %51 = sbr.rel (0) target = $region33
    $region32: #{autoencoder_forward.1} parent=1 // pred_region
      %52 = dma.done [#allocation5], 16384
    $region33: #{autoencoder_forward.1} parent=1 // pred_fallthru
      _
    %v53 = vld [vmem:[%s0] sm:$0xff]
    %v54 = vld [vmem:[%s0 + $0x8] sm:$0xff]
    %v55 = vld [vmem:[#allocation2] sm:$0xff]
    %v56 = vld [vmem:[#allocation2 + $0x8] sm:$0xff]
    %v57 = vld [vmem:[#allocation2 + $0x10] sm:$0xff]
    %v58 = vld [vmem:[#allocation2 + $0x18] sm:$0xff]
    %v59 = vld [vmem:[#allocation2 + $0x20] sm:$0xff]
    %v60 = vld [vmem:[#allocation2 + $0x28] sm:$0xff]
    %v61 = vld [vmem:[#allocation2 + $0x30] sm:$0xff]
    %v62 = vld [vmem:[#allocation2 + $0x38] sm:$0xff]
    %v63 = vld [vmem:[#allocation2 + $0x40] sm:$0xff]
    %v64 = vld [vmem:[#allocation2 + $0x48] sm:$0xff]
    %v65 = vld [vmem:[#allocation2 + $0x50] sm:$0xff]
    %v66 = vld [vmem:[#allocation2 + $0x58] sm:$0xff]
    %v67 = vld [vmem:[#allocation2 + $0x60] sm:$0xff]
    %v68 = vld [vmem:[#allocation2 + $0x68] sm:$0xff]
    %v69 = vld [vmem:[#allocation2 + $0x70] sm:$0xff]
    %v70 = vld [vmem:[#allocation2 + $0x78] sm:$0xff]
    %v71 = vld [vmem:[#allocation2 + $0x80] sm:$0xff]
    %v72 = vld [vmem:[#allocation2 + $0x88] sm:$0xff]
    %v73 = vld [vmem:[#allocation2 + $0x90] sm:$0xff]
    %v74 = vld [vmem:[#allocation2 + $0x98] sm:$0xff]
    %v75 = vld [vmem:[#allocation2 + $0xa0] sm:$0xff]
    %v76 = vld [vmem:[#allocation2 + $0xa8] sm:$0xff]
    %v77 = vld [vmem:[#allocation2 + $0xb0] sm:$0xff]
    %v78 = vld [vmem:[#allocation2 + $0xb8] sm:$0xff]
    %v79 = vld [vmem:[#allocation2 + $0xc0] sm:$0xff]
    %v80 = vld [vmem:[#allocation2 + $0xc8] sm:$0xff]
    %v81 = vld [vmem:[#allocation2 + $0xd0] sm:$0xff]
    %v82 = vld [vmem:[#allocation2 + $0xd8] sm:$0xff]
    %v83 = vld [vmem:[#allocation2 + $0xe0] sm:$0xff]
    %v84 = vld [vmem:[#allocation2 + $0xe8] sm:$0xff]
    %v85 = vld [vmem:[#allocation2 + $0xf0] sm:$0xff]
    %v86 = vld [vmem:[#allocation2 + $0xf8] sm:$0xff]
    %v87 = vld [vmem:[#allocation2 + $0x100] sm:$0xff]
    %v88 = vld [vmem:[#allocation2 + $0x108] sm:$0xff]
    %v89 = vld [vmem:[#allocation2 + $0x110] sm:$0xff]
    %v90 = vld [vmem:[#allocation2 + $0x118] sm:$0xff]
    %v91 = vld [vmem:[#allocation2 + $0x120] sm:$0xff]
    %v92 = vld [vmem:[#allocation2 + $0x128] sm:$0xff]
    %v93 = vld [vmem:[#allocation2 + $0x130] sm:$0xff]
    %v94 = vld [vmem:[#allocation2 + $0x138] sm:$0xff]
    %v95 = vld [vmem:[#allocation2 + $0x140] sm:$0xff]
    %v96 = vld [vmem:[#allocation2 + $0x148] sm:$0xff]
    %v97 = vld [vmem:[#allocation2 + $0x150] sm:$0xff]
    %v98 = vld [vmem:[#allocation2 + $0x158] sm:$0xff]
    %v99 = vld [vmem:[#allocation2 + $0x160] sm:$0xff]
    %v100 = vld [vmem:[#allocation2 + $0x168] sm:$0xff]
    %v101 = vld [vmem:[#allocation2 + $0x170] sm:$0xff]
    %v102 = vld [vmem:[#allocation2 + $0x178] sm:$0xff]
    %v103 = vld [vmem:[#allocation2 + $0x180] sm:$0xff]
    %v104 = vld [vmem:[#allocation2 + $0x188] sm:$0xff]
    %v105 = vld [vmem:[#allocation2 + $0x190] sm:$0xff]
    %v106 = vld [vmem:[#allocation2 + $0x198] sm:$0xff]
    %v107 = vld [vmem:[#allocation2 + $0x1a0] sm:$0xff]
    %v108 = vld [vmem:[#allocation2 + $0x1a8] sm:$0xff]
    %v109 = vld [vmem:[#allocation2 + $0x1b0] sm:$0xff]
    %v110 = vld [vmem:[#allocation2 + $0x1b8] sm:$0xff]
    %v111 = vld [vmem:[#allocation2 + $0x1c0] sm:$0xff]
    %v112 = vld [vmem:[#allocation2 + $0x1c8] sm:$0xff]
    %v113 = vld [vmem:[#allocation2 + $0x1d0] sm:$0xff]
    %v114 = vld [vmem:[#allocation2 + $0x1d8] sm:$0xff]
    %v115 = vld [vmem:[#allocation2 + $0x1e0] sm:$0xff]
    %v116 = vld [vmem:[#allocation2 + $0x1e8] sm:$0xff]
    %v117 = vld [vmem:[#allocation2 + $0x1f0] sm:$0xff]
    %v118 = vld [vmem:[#allocation2 + $0x1f8] sm:$0xff]
    %v119 = vld [vmem:[#allocation2 + $0x200] sm:$0xff]
    %v120 = vld [vmem:[#allocation2 + $0x208] sm:$0xff]
    %v121 = vld [vmem:[#allocation2 + $0x210] sm:$0xff]
    %v122 = vld [vmem:[#allocation2 + $0x218] sm:$0xff]
    %v123 = vld [vmem:[#allocation2 + $0x220] sm:$0xff]
    %v124 = vld [vmem:[#allocation2 + $0x228] sm:$0xff]
    %v125 = vld [vmem:[#allocation2 + $0x230] sm:$0xff]
    %v126 = vld [vmem:[#allocation2 + $0x238] sm:$0xff]
    %v127 = vld [vmem:[#allocation2 + $0x240] sm:$0xff]
    %v128 = vld [vmem:[#allocation2 + $0x248] sm:$0xff]
    %v129 = vld [vmem:[#allocation2 + $0x250] sm:$0xff]
    %v130 = vld [vmem:[#allocation2 + $0x258] sm:$0xff]
    %v131 = vld [vmem:[#allocation2 + $0x260] sm:$0xff]
    %v132 = vld [vmem:[#allocation2 + $0x268] sm:$0xff]
    %v133 = vld [vmem:[#allocation2 + $0x270] sm:$0xff]
    %v134 = vld [vmem:[#allocation2 + $0x278] sm:$0xff]
    %v135 = vld [vmem:[#allocation2 + $0x280] sm:$0xff]
    %v136 = vld [vmem:[#allocation2 + $0x288] sm:$0xff]
    %v137 = vld [vmem:[#allocation2 + $0x290] sm:$0xff]
    %v138 = vld [vmem:[#allocation2 + $0x298] sm:$0xff]
    %v139 = vld [vmem:[#allocation2 + $0x2a0] sm:$0xff]
    %v140 = vld [vmem:[#allocation2 + $0x2a8] sm:$0xff]
    %v141 = vld [vmem:[#allocation2 + $0x2b0] sm:$0xff]
    %v142 = vld [vmem:[#allocation2 + $0x2b8] sm:$0xff]
    %v143 = vld [vmem:[#allocation2 + $0x2c0] sm:$0xff]
    %v144 = vld [vmem:[#allocation2 + $0x2c8] sm:$0xff]
    %v145 = vld [vmem:[#allocation2 + $0x2d0] sm:$0xff]
    %v146 = vld [vmem:[#allocation2 + $0x2d8] sm:$0xff]
    %v147 = vld [vmem:[#allocation2 + $0x2e0] sm:$0xff]
    %v148 = vld [vmem:[#allocation2 + $0x2e8] sm:$0xff]
    %v149 = vld [vmem:[#allocation2 + $0x2f0] sm:$0xff]
    %v150 = vld [vmem:[#allocation2 + $0x2f8] sm:$0xff]
    %v151 = vld [vmem:[#allocation2 + $0x300] sm:$0xff]
    %v152 = vld [vmem:[#allocation2 + $0x308] sm:$0xff]
    %v153 = vld [vmem:[#allocation2 + $0x310] sm:$0xff]
    %v154 = vld [vmem:[#allocation2 + $0x318] sm:$0xff]
    %v155 = vld [vmem:[#allocation2 + $0x320] sm:$0xff]
    %v156 = vld [vmem:[#allocation2 + $0x328] sm:$0xff]
    %v157 = vld [vmem:[#allocation2 + $0x330] sm:$0xff]
    %v158 = vld [vmem:[#allocation2 + $0x338] sm:$0xff]
    %v159 = vld [vmem:[#allocation2 + $0x340] sm:$0xff]
    %v160 = vld [vmem:[#allocation2 + $0x348] sm:$0xff]
    %v161 = vld [vmem:[#allocation2 + $0x350] sm:$0xff]
    %v162 = vld [vmem:[#allocation2 + $0x358] sm:$0xff]
    %v163 = vld [vmem:[#allocation2 + $0x360] sm:$0xff]
    %v164 = vld [vmem:[#allocation2 + $0x368] sm:$0xff]
    %v165 = vld [vmem:[#allocation2 + $0x370] sm:$0xff]
    %v166 = vld [vmem:[#allocation2 + $0x378] sm:$0xff]
    %v167 = vld [vmem:[#allocation2 + $0x380] sm:$0xff]
    %v168 = vld [vmem:[#allocation2 + $0x388] sm:$0xff]
    %v169 = vld [vmem:[#allocation2 + $0x390] sm:$0xff]
    %v170 = vld [vmem:[#allocation2 + $0x398] sm:$0xff]
    %v171 = vld [vmem:[#allocation2 + $0x3a0] sm:$0xff]
    %v172 = vld [vmem:[#allocation2 + $0x3a8] sm:$0xff]
    %v173 = vld [vmem:[#allocation2 + $0x3b0] sm:$0xff]
    %v174 = vld [vmem:[#allocation2 + $0x3b8] sm:$0xff]
    %v175 = vld [vmem:[#allocation2 + $0x3c0] sm:$0xff]
    %v176 = vld [vmem:[#allocation2 + $0x3c8] sm:$0xff]
    %v177 = vld [vmem:[#allocation2 + $0x3d0] sm:$0xff]
    %v178 = vld [vmem:[#allocation2 + $0x3d8] sm:$0xff]
    %v179 = vld [vmem:[#allocation2 + $0x3e0] sm:$0xff]
    %v180 = vld [vmem:[#allocation2 + $0x3e8] sm:$0xff]
    %v181 = vld [vmem:[#allocation2 + $0x3f0] sm:$0xff]
    %v182 = vld [vmem:[#allocation2 + $0x3f8] sm:$0xff]
    %v183 = vld [vmem:[%s3] sm:$0x1]
    %v185 = vlaneseq
    %v186 = vshrl.u32 %v185, 7
    %v187 = vsub.s32 0, %v186
    %v188 = vrot.slane %v183, %v187
    %v192 = vcombine.high %v53, %v53
    %v194 = vunpack.c.l.s4 1983009808
    %v195 = vunpack.c.0.s8 %v194
    %v196 = vlaneseq
    %v197 = vshrl.u32 %v196, 7
    %v198 = vsub.s32 %v195, %v197
    %v199 = vrot.slane %v53, %v198
    %v201 = vunpack.c.l.s4 1983009808
    %v202 = vunpack.c.0.s8 %v201
    %v203 = vlaneseq
    %v204 = vshrl.u32 %v203, 7
    %v205 = vsub.s32 %v202, %v204
    %v206 = vrot.slane %v192, %v205
    %v207 = vcombine.high %v199, %v199
    %v208 = vcombine.high %v206, %v206
    %v209 = vcombine.high %v54, %v54
    %v211 = vunpack.c.l.s4 1983009808
    %v212 = vunpack.c.0.s8 %v211
    %v213 = vlaneseq
    %v214 = vshrl.u32 %v213, 7
    %v215 = vsub.s32 %v212, %v214
    %v216 = vrot.slane %v54, %v215
    %v218 = vunpack.c.l.s4 1983009808
    %v219 = vunpack.c.0.s8 %v218
    %v220 = vlaneseq
    %v221 = vshrl.u32 %v220, 7
    %v222 = vsub.s32 %v219, %v221
    %v223 = vrot.slane %v209, %v222
    %v224 = vcombine.high %v216, %v216
    %v225 = vcombine.high %v223, %v223
    %234 = vmatprep.subr.mxu0 0.0
    %235 = vmatpush1.msra.mxu0 %v70
    %236 = vmatprep.subr.mxu0 0.0
    %237 = vmatpush1.msra.mxu0 %v69
    %238 = vmatprep.subr.mxu0 0.0
    %239 = vmatpush1.msra.mxu0 %v68
    %240 = vmatprep.subr.mxu0 0.0
    %241 = vmatpush1.msra.mxu0 %v67
    %242 = vmatprep.subr.mxu0 0.0
    %243 = vmatpush1.msra.mxu0 %v66
    %244 = vmatprep.subr.mxu0 0.0
    %245 = vmatpush1.msra.mxu0 %v65
    %246 = vmatprep.subr.mxu0 0.0
    %247 = vmatpush1.msra.mxu0 %v64
    %248 = vmatprep.subr.mxu0 0.0
    %249 = vmatpush1.msra.mxu0 %v63
    %250 = vmatprep.subr.mxu0 0.0
    %251 = vmatpush1.msra.mxu0 %v62
    %252 = vmatprep.subr.mxu0 0.0
    %253 = vmatpush1.msra.mxu0 %v61
    %254 = vmatprep.subr.mxu0 0.0
    %255 = vmatpush1.msra.mxu0 %v60
    %256 = vmatprep.subr.mxu0 0.0
    %257 = vmatpush1.msra.mxu0 %v59
    %258 = vmatprep.subr.mxu0 0.0
    %259 = vmatpush1.msra.mxu0 %v58
    %260 = vmatprep.subr.mxu0 0.0
    %261 = vmatpush1.msra.mxu0 %v57
    %262 = vmatprep.subr.mxu0 0.0
    %263 = vmatpush1.msra.mxu0 %v56
    %264 = vmatprep.subr.mxu0 0.0
    %265 = vmatpush1.msra.mxu0 %v55
    %266 = vmatprep.subr.mxu0 0.0
    %267 = vmatpush2.msra.mxu0 %v86
    %268 = vmatprep.subr.mxu0 0.0
    %269 = vmatpush2.msra.mxu0 %v85
    %270 = vmatprep.subr.mxu0 0.0
    %271 = vmatpush2.msra.mxu0 %v84
    %272 = vmatprep.subr.mxu0 0.0
    %273 = vmatpush2.msra.mxu0 %v83
    %274 = vmatprep.subr.mxu0 0.0
    %275 = vmatpush2.msra.mxu0 %v82
    %276 = vmatprep.subr.mxu0 0.0
    %277 = vmatpush2.msra.mxu0 %v81
    %278 = vmatprep.subr.mxu0 0.0
    %279 = vmatpush2.msra.mxu0 %v80
    %280 = vmatprep.subr.mxu0 0.0
    %281 = vmatpush2.msra.mxu0 %v79
    %282 = vmatprep.subr.mxu0 0.0
    %283 = vmatpush2.msra.mxu0 %v78
    %284 = vmatprep.subr.mxu0 0.0
    %285 = vmatpush2.msra.mxu0 %v77
    %286 = vmatprep.subr.mxu0 0.0
    %287 = vmatpush2.msra.mxu0 %v76
    %288 = vmatprep.subr.mxu0 0.0
    %289 = vmatpush2.msra.mxu0 %v75
    %290 = vmatprep.subr.mxu0 0.0
    %291 = vmatpush2.msra.mxu0 %v74
    %292 = vmatprep.subr.mxu0 0.0
    %293 = vmatpush2.msra.mxu0 %v73
    %294 = vmatprep.subr.mxu0 0.0
    %295 = vmatpush2.msra.mxu0 %v72
    %296 = vmatprep.subr.mxu0 0.0
    %297 = vmatpush2.msra.mxu0 %v71
    %298 = vmatprep.mubr.f32.mxu0 %v207
    %299 = vmatmul.mubr.f32.gmra.mxu0 %v199
    %v300 = vpop.f32.mrf.mxu0
    %v301 = vadd.f32 %v188, %v300
    %v302 = vpop.f32.mrf.mxu0
    %303 = vdwg.mxu0
    %304 = vmatprep.subr.mxu0 0.0
    %305 = vmatpush1.msra.mxu0 %v102
    %306 = vmatprep.subr.mxu0 0.0
    %307 = vmatpush1.msra.mxu0 %v101
    %308 = vmatprep.subr.mxu0 0.0
    %309 = vmatpush1.msra.mxu0 %v100
    %310 = vmatprep.subr.mxu0 0.0
    %311 = vmatpush1.msra.mxu0 %v99
    %312 = vmatprep.subr.mxu0 0.0
    %313 = vmatpush1.msra.mxu0 %v98
    %314 = vmatprep.subr.mxu0 0.0
    %315 = vmatpush1.msra.mxu0 %v97
    %316 = vmatprep.subr.mxu0 0.0
    %317 = vmatpush1.msra.mxu0 %v96
    %318 = vmatprep.subr.mxu0 0.0
    %319 = vmatpush1.msra.mxu0 %v95
    %320 = vmatprep.subr.mxu0 0.0
    %321 = vmatpush1.msra.mxu0 %v94
    %322 = vmatprep.subr.mxu0 0.0
    %323 = vmatpush1.msra.mxu0 %v93
    %324 = vmatprep.subr.mxu0 0.0
    %325 = vmatpush1.msra.mxu0 %v92
    %326 = vmatprep.subr.mxu0 0.0
    %327 = vmatpush1.msra.mxu0 %v91
    %328 = vmatprep.subr.mxu0 0.0
    %329 = vmatpush1.msra.mxu0 %v90
    %330 = vmatprep.subr.mxu0 0.0
    %331 = vmatpush1.msra.mxu0 %v89
    %332 = vmatprep.subr.mxu0 0.0
    %333 = vmatpush1.msra.mxu0 %v88
    %334 = vmatprep.subr.mxu0 0.0
    %335 = vmatpush1.msra.mxu0 %v87
    %336 = vmatprep.subr.mxu0 0.0
    %337 = vmatpush2.msra.mxu0 %v118
    %338 = vmatprep.subr.mxu0 0.0
    %339 = vmatpush2.msra.mxu0 %v117
    %340 = vmatprep.subr.mxu0 0.0
    %341 = vmatpush2.msra.mxu0 %v116
    %342 = vmatprep.subr.mxu0 0.0
    %343 = vmatpush2.msra.mxu0 %v115
    %344 = vmatprep.subr.mxu0 0.0
    %345 = vmatpush2.msra.mxu0 %v114
    %346 = vmatprep.subr.mxu0 0.0
    %347 = vmatpush2.msra.mxu0 %v113
    %348 = vmatprep.subr.mxu0 0.0
    %349 = vmatpush2.msra.mxu0 %v112
    %350 = vmatprep.subr.mxu0 0.0
    %351 = vmatpush2.msra.mxu0 %v111
    %352 = vmatprep.subr.mxu0 0.0
    %353 = vmatpush2.msra.mxu0 %v110
    %354 = vmatprep.subr.mxu0 0.0
    %355 = vmatpush2.msra.mxu0 %v109
    %356 = vmatprep.subr.mxu0 0.0
    %357 = vmatpush2.msra.mxu0 %v108
    %358 = vmatprep.subr.mxu0 0.0
    %359 = vmatpush2.msra.mxu0 %v107
    %360 = vmatprep.subr.mxu0 0.0
    %361 = vmatpush2.msra.mxu0 %v106
    %362 = vmatprep.subr.mxu0 0.0
    %363 = vmatpush2.msra.mxu0 %v105
    %364 = vmatprep.subr.mxu0 0.0
    %365 = vmatpush2.msra.mxu0 %v104
    %366 = vmatprep.subr.mxu0 0.0
    %367 = vmatpush2.msra.mxu0 %v103
    %368 = vmatprep.mubr.f32.mxu0 %v208
    %369 = vmatmul.mubr.f32.gmra.mxu0 %v206
    %v370 = vpop.f32.mrf.mxu0
    %v371 = vadd.f32 %v301, %v370
    %v372 = vpop.f32.mrf.mxu0
    %373 = vdwg.mxu0
    %374 = vmatprep.subr.mxu0 0.0
    %375 = vmatpush1.msra.mxu0 %v134
    %376 = vmatprep.subr.mxu0 0.0
    %377 = vmatpush1.msra.mxu0 %v133
    %378 = vmatprep.subr.mxu0 0.0
    %379 = vmatpush1.msra.mxu0 %v132
    %380 = vmatprep.subr.mxu0 0.0
    %381 = vmatpush1.msra.mxu0 %v131
    %382 = vmatprep.subr.mxu0 0.0
    %383 = vmatpush1.msra.mxu0 %v130
    %384 = vmatprep.subr.mxu0 0.0
    %385 = vmatpush1.msra.mxu0 %v129
    %386 = vmatprep.subr.mxu0 0.0
    %387 = vmatpush1.msra.mxu0 %v128
    %388 = vmatprep.subr.mxu0 0.0
    %389 = vmatpush1.msra.mxu0 %v127
    %390 = vmatprep.subr.mxu0 0.0
    %391 = vmatpush1.msra.mxu0 %v126
    %392 = vmatprep.subr.mxu0 0.0
    %393 = vmatpush1.msra.mxu0 %v125
    %394 = vmatprep.subr.mxu0 0.0
    %395 = vmatpush1.msra.mxu0 %v124
    %396 = vmatprep.subr.mxu0 0.0
    %397 = vmatpush1.msra.mxu0 %v123
    %398 = vmatprep.subr.mxu0 0.0
    %399 = vmatpush1.msra.mxu0 %v122
    %400 = vmatprep.subr.mxu0 0.0
    %401 = vmatpush1.msra.mxu0 %v121
    %402 = vmatprep.subr.mxu0 0.0
    %403 = vmatpush1.msra.mxu0 %v120
    %404 = vmatprep.subr.mxu0 0.0
    %405 = vmatpush1.msra.mxu0 %v119
    %406 = vmatprep.subr.mxu0 0.0
    %407 = vmatpush2.msra.mxu0 %v150
    %408 = vmatprep.subr.mxu0 0.0
    %409 = vmatpush2.msra.mxu0 %v149
    %410 = vmatprep.subr.mxu0 0.0
    %411 = vmatpush2.msra.mxu0 %v148
    %412 = vmatprep.subr.mxu0 0.0
    %413 = vmatpush2.msra.mxu0 %v147
    %414 = vmatprep.subr.mxu0 0.0
    %415 = vmatpush2.msra.mxu0 %v146
    %416 = vmatprep.subr.mxu0 0.0
    %417 = vmatpush2.msra.mxu0 %v145
    %418 = vmatprep.subr.mxu0 0.0
    %419 = vmatpush2.msra.mxu0 %v144
    %420 = vmatprep.subr.mxu0 0.0
    %421 = vmatpush2.msra.mxu0 %v143
    %422 = vmatprep.subr.mxu0 0.0
    %423 = vmatpush2.msra.mxu0 %v142
    %424 = vmatprep.subr.mxu0 0.0
    %425 = vmatpush2.msra.mxu0 %v141
    %426 = vmatprep.subr.mxu0 0.0
    %427 = vmatpush2.msra.mxu0 %v140
    %428 = vmatprep.subr.mxu0 0.0
    %429 = vmatpush2.msra.mxu0 %v139
    %430 = vmatprep.subr.mxu0 0.0
    %431 = vmatpush2.msra.mxu0 %v138
    %432 = vmatprep.subr.mxu0 0.0
    %433 = vmatpush2.msra.mxu0 %v137
    %434 = vmatprep.subr.mxu0 0.0
    %435 = vmatpush2.msra.mxu0 %v136
    %436 = vmatprep.subr.mxu0 0.0
    %437 = vmatpush2.msra.mxu0 %v135
    %438 = vmatprep.mubr.f32.mxu0 %v224
    %439 = vmatmul.mubr.f32.gmra.mxu0 %v216
    %v440 = vpop.f32.mrf.mxu0
    %v441 = vadd.f32 %v371, %v440
    %v442 = vpop.f32.mrf.mxu0
    %443 = vdwg.mxu0
    %444 = vmatprep.subr.mxu0 0.0
    %445 = vmatpush1.msra.mxu0 %v166
    %446 = vmatprep.subr.mxu0 0.0
    %447 = vmatpush1.msra.mxu0 %v165
    %448 = vmatprep.subr.mxu0 0.0
    %449 = vmatpush1.msra.mxu0 %v164
    %450 = vmatprep.subr.mxu0 0.0
    %451 = vmatpush1.msra.mxu0 %v163
    %452 = vmatprep.subr.mxu0 0.0
    %453 = vmatpush1.msra.mxu0 %v162
    %454 = vmatprep.subr.mxu0 0.0
    %455 = vmatpush1.msra.mxu0 %v161
    %456 = vmatprep.subr.mxu0 0.0
    %457 = vmatpush1.msra.mxu0 %v160
    %458 = vmatprep.subr.mxu0 0.0
    %459 = vmatpush1.msra.mxu0 %v159
    %460 = vmatprep.subr.mxu0 0.0
    %461 = vmatpush1.msra.mxu0 %v158
    %462 = vmatprep.subr.mxu0 0.0
    %463 = vmatpush1.msra.mxu0 %v157
    %464 = vmatprep.subr.mxu0 0.0
    %465 = vmatpush1.msra.mxu0 %v156
    %466 = vmatprep.subr.mxu0 0.0
    %467 = vmatpush1.msra.mxu0 %v155
    %468 = vmatprep.subr.mxu0 0.0
    %469 = vmatpush1.msra.mxu0 %v154
    %470 = vmatprep.subr.mxu0 0.0
    %471 = vmatpush1.msra.mxu0 %v153
    %472 = vmatprep.subr.mxu0 0.0
    %473 = vmatpush1.msra.mxu0 %v152
    %474 = vmatprep.subr.mxu0 0.0
    %475 = vmatpush1.msra.mxu0 %v151
    %476 = vmatprep.subr.mxu0 0.0
    %477 = vmatpush2.msra.mxu0 %v182
    %478 = vmatprep.subr.mxu0 0.0
    %479 = vmatpush2.msra.mxu0 %v181
    %480 = vmatprep.subr.mxu0 0.0
    %481 = vmatpush2.msra.mxu0 %v180
    %482 = vmatprep.subr.mxu0 0.0
    %483 = vmatpush2.msra.mxu0 %v179
    %484 = vmatprep.subr.mxu0 0.0
    %485 = vmatpush2.msra.mxu0 %v178
    %486 = vmatprep.subr.mxu0 0.0
    %487 = vmatpush2.msra.mxu0 %v177
    %488 = vmatprep.subr.mxu0 0.0
    %489 = vmatpush2.msra.mxu0 %v176
    %490 = vmatprep.subr.mxu0 0.0
    %491 = vmatpush2.msra.mxu0 %v175
    %492 = vmatprep.subr.mxu0 0.0
    %493 = vmatpush2.msra.mxu0 %v174
    %494 = vmatprep.subr.mxu0 0.0
    %495 = vmatpush2.msra.mxu0 %v173
    %496 = vmatprep.subr.mxu0 0.0
    %497 = vmatpush2.msra.mxu0 %v172
    %498 = vmatprep.subr.mxu0 0.0
    %499 = vmatpush2.msra.mxu0 %v171
    %500 = vmatprep.subr.mxu0 0.0
    %501 = vmatpush2.msra.mxu0 %v170
    %502 = vmatprep.subr.mxu0 0.0
    %503 = vmatpush2.msra.mxu0 %v169
    %504 = vmatprep.subr.mxu0 0.0
    %505 = vmatpush2.msra.mxu0 %v168
    %506 = vmatprep.subr.mxu0 0.0
    %507 = vmatpush2.msra.mxu0 %v167
    %508 = vmatprep.mubr.f32.mxu0 %v225
    %509 = vmatmul.mubr.f32.gmra.mxu0 %v223
    %v510 = vpop.f32.mrf.mxu0
    %v511 = vadd.f32 %v441, %v510
    %v512 = vpop.f32.mrf.mxu0
    %513 = vdwg.mxu0
    %v514 = vld [vmem:[#allocation4] sm:$0xff]
    %v515 = vld [vmem:[#allocation4 + $0x8] sm:$0xff]
    %v516 = vld [vmem:[#allocation4 + $0x10] sm:$0xff]
    %v517 = vld [vmem:[#allocation4 + $0x18] sm:$0xff]
    %v518 = vld [vmem:[#allocation4 + $0x20] sm:$0xff]
    %v519 = vld [vmem:[#allocation4 + $0x28] sm:$0xff]
    %v520 = vld [vmem:[#allocation4 + $0x30] sm:$0xff]
    %v521 = vld [vmem:[#allocation4 + $0x38] sm:$0xff]
    %v522 = vld [vmem:[#allocation4 + $0x40] sm:$0xff]
    %v523 = vld [vmem:[#allocation4 + $0x48] sm:$0xff]
    %v524 = vld [vmem:[#allocation4 + $0x50] sm:$0xff]
    %v525 = vld [vmem:[#allocation4 + $0x58] sm:$0xff]
    %v526 = vld [vmem:[#allocation4 + $0x60] sm:$0xff]
    %v527 = vld [vmem:[#allocation4 + $0x68] sm:$0xff]
    %v528 = vld [vmem:[#allocation4 + $0x70] sm:$0xff]
    %v529 = vld [vmem:[#allocation4 + $0x78] sm:$0xff]
    %v530 = vld [vmem:[#allocation4 + $0x80] sm:$0xff]
    %v531 = vld [vmem:[#allocation4 + $0x88] sm:$0xff]
    %v532 = vld [vmem:[#allocation4 + $0x90] sm:$0xff]
    %v533 = vld [vmem:[#allocation4 + $0x98] sm:$0xff]
    %v534 = vld [vmem:[#allocation4 + $0xa0] sm:$0xff]
    %v535 = vld [vmem:[#allocation4 + $0xa8] sm:$0xff]
    %v536 = vld [vmem:[#allocation4 + $0xb0] sm:$0xff]
    %v537 = vld [vmem:[#allocation4 + $0xb8] sm:$0xff]
    %v538 = vld [vmem:[#allocation4 + $0xc0] sm:$0xff]
    %v539 = vld [vmem:[#allocation4 + $0xc8] sm:$0xff]
    %v540 = vld [vmem:[#allocation4 + $0xd0] sm:$0xff]
    %v541 = vld [vmem:[#allocation4 + $0xd8] sm:$0xff]
    %v542 = vld [vmem:[#allocation4 + $0xe0] sm:$0xff]
    %v543 = vld [vmem:[#allocation4 + $0xe8] sm:$0xff]
    %v544 = vld [vmem:[#allocation4 + $0xf0] sm:$0xff]
    %v545 = vld [vmem:[#allocation4 + $0xf8] sm:$0xff]
    %v546 = vld [vmem:[#allocation4 + $0x100] sm:$0xff]
    %v547 = vld [vmem:[#allocation4 + $0x108] sm:$0xff]
    %v548 = vld [vmem:[#allocation4 + $0x110] sm:$0xff]
    %v549 = vld [vmem:[#allocation4 + $0x118] sm:$0xff]
    %v550 = vld [vmem:[#allocation4 + $0x120] sm:$0xff]
    %v551 = vld [vmem:[#allocation4 + $0x128] sm:$0xff]
    %v552 = vld [vmem:[#allocation4 + $0x130] sm:$0xff]
    %v553 = vld [vmem:[#allocation4 + $0x138] sm:$0xff]
    %v554 = vld [vmem:[#allocation4 + $0x140] sm:$0xff]
    %v555 = vld [vmem:[#allocation4 + $0x148] sm:$0xff]
    %v556 = vld [vmem:[#allocation4 + $0x150] sm:$0xff]
    %v557 = vld [vmem:[#allocation4 + $0x158] sm:$0xff]
    %v558 = vld [vmem:[#allocation4 + $0x160] sm:$0xff]
    %v559 = vld [vmem:[#allocation4 + $0x168] sm:$0xff]
    %v560 = vld [vmem:[#allocation4 + $0x170] sm:$0xff]
    %v561 = vld [vmem:[#allocation4 + $0x178] sm:$0xff]
    %v562 = vld [vmem:[#allocation4 + $0x180] sm:$0xff]
    %v563 = vld [vmem:[#allocation4 + $0x188] sm:$0xff]
    %v564 = vld [vmem:[#allocation4 + $0x190] sm:$0xff]
    %v565 = vld [vmem:[#allocation4 + $0x198] sm:$0xff]
    %v566 = vld [vmem:[#allocation4 + $0x1a0] sm:$0xff]
    %v567 = vld [vmem:[#allocation4 + $0x1a8] sm:$0xff]
    %v568 = vld [vmem:[#allocation4 + $0x1b0] sm:$0xff]
    %v569 = vld [vmem:[#allocation4 + $0x1b8] sm:$0xff]
    %v570 = vld [vmem:[#allocation4 + $0x1c0] sm:$0xff]
    %v571 = vld [vmem:[#allocation4 + $0x1c8] sm:$0xff]
    %v572 = vld [vmem:[#allocation4 + $0x1d0] sm:$0xff]
    %v573 = vld [vmem:[#allocation4 + $0x1d8] sm:$0xff]
    %v574 = vld [vmem:[#allocation4 + $0x1e0] sm:$0xff]
    %v575 = vld [vmem:[#allocation4 + $0x1e8] sm:$0xff]
    %v576 = vld [vmem:[#allocation4 + $0x1f0] sm:$0xff]
    %v577 = vld [vmem:[#allocation4 + $0x1f8] sm:$0xff]
    %v578 = vld [vmem:[#allocation4 + $0x200] sm:$0xff]
    %v579 = vld [vmem:[#allocation4 + $0x208] sm:$0xff]
    %v580 = vld [vmem:[#allocation4 + $0x210] sm:$0xff]
    %v581 = vld [vmem:[#allocation4 + $0x218] sm:$0xff]
    %v582 = vld [vmem:[#allocation4 + $0x220] sm:$0xff]
    %v583 = vld [vmem:[#allocation4 + $0x228] sm:$0xff]
    %v584 = vld [vmem:[#allocation4 + $0x230] sm:$0xff]
    %v585 = vld [vmem:[#allocation4 + $0x238] sm:$0xff]
    %v586 = vld [vmem:[#allocation4 + $0x240] sm:$0xff]
    %v587 = vld [vmem:[#allocation4 + $0x248] sm:$0xff]
    %v588 = vld [vmem:[#allocation4 + $0x250] sm:$0xff]
    %v589 = vld [vmem:[#allocation4 + $0x258] sm:$0xff]
    %v590 = vld [vmem:[#allocation4 + $0x260] sm:$0xff]
    %v591 = vld [vmem:[#allocation4 + $0x268] sm:$0xff]
    %v592 = vld [vmem:[#allocation4 + $0x270] sm:$0xff]
    %v593 = vld [vmem:[#allocation4 + $0x278] sm:$0xff]
    %v594 = vld [vmem:[#allocation4 + $0x280] sm:$0xff]
    %v595 = vld [vmem:[#allocation4 + $0x288] sm:$0xff]
    %v596 = vld [vmem:[#allocation4 + $0x290] sm:$0xff]
    %v597 = vld [vmem:[#allocation4 + $0x298] sm:$0xff]
    %v598 = vld [vmem:[#allocation4 + $0x2a0] sm:$0xff]
    %v599 = vld [vmem:[#allocation4 + $0x2a8] sm:$0xff]
    %v600 = vld [vmem:[#allocation4 + $0x2b0] sm:$0xff]
    %v601 = vld [vmem:[#allocation4 + $0x2b8] sm:$0xff]
    %v602 = vld [vmem:[#allocation4 + $0x2c0] sm:$0xff]
    %v603 = vld [vmem:[#allocation4 + $0x2c8] sm:$0xff]
    %v604 = vld [vmem:[#allocation4 + $0x2d0] sm:$0xff]
    %v605 = vld [vmem:[#allocation4 + $0x2d8] sm:$0xff]
    %v606 = vld [vmem:[#allocation4 + $0x2e0] sm:$0xff]
    %v607 = vld [vmem:[#allocation4 + $0x2e8] sm:$0xff]
    %v608 = vld [vmem:[#allocation4 + $0x2f0] sm:$0xff]
    %v609 = vld [vmem:[#allocation4 + $0x2f8] sm:$0xff]
    %v610 = vld [vmem:[#allocation4 + $0x300] sm:$0xff]
    %v611 = vld [vmem:[#allocation4 + $0x308] sm:$0xff]
    %v612 = vld [vmem:[#allocation4 + $0x310] sm:$0xff]
    %v613 = vld [vmem:[#allocation4 + $0x318] sm:$0xff]
    %v614 = vld [vmem:[#allocation4 + $0x320] sm:$0xff]
    %v615 = vld [vmem:[#allocation4 + $0x328] sm:$0xff]
    %v616 = vld [vmem:[#allocation4 + $0x330] sm:$0xff]
    %v617 = vld [vmem:[#allocation4 + $0x338] sm:$0xff]
    %v618 = vld [vmem:[#allocation4 + $0x340] sm:$0xff]
    %v619 = vld [vmem:[#allocation4 + $0x348] sm:$0xff]
    %v620 = vld [vmem:[#allocation4 + $0x350] sm:$0xff]
    %v621 = vld [vmem:[#allocation4 + $0x358] sm:$0xff]
    %v622 = vld [vmem:[#allocation4 + $0x360] sm:$0xff]
    %v623 = vld [vmem:[#allocation4 + $0x368] sm:$0xff]
    %v624 = vld [vmem:[#allocation4 + $0x370] sm:$0xff]
    %v625 = vld [vmem:[#allocation4 + $0x378] sm:$0xff]
    %v626 = vld [vmem:[#allocation4 + $0x380] sm:$0xff]
    %v627 = vld [vmem:[#allocation4 + $0x388] sm:$0xff]
    %v628 = vld [vmem:[#allocation4 + $0x390] sm:$0xff]
    %v629 = vld [vmem:[#allocation4 + $0x398] sm:$0xff]
    %v630 = vld [vmem:[#allocation4 + $0x3a0] sm:$0xff]
    %v631 = vld [vmem:[#allocation4 + $0x3a8] sm:$0xff]
    %v632 = vld [vmem:[#allocation4 + $0x3b0] sm:$0xff]
    %v633 = vld [vmem:[#allocation4 + $0x3b8] sm:$0xff]
    %v634 = vld [vmem:[#allocation4 + $0x3c0] sm:$0xff]
    %v635 = vld [vmem:[#allocation4 + $0x3c8] sm:$0xff]
    %v636 = vld [vmem:[#allocation4 + $0x3d0] sm:$0xff]
    %v637 = vld [vmem:[#allocation4 + $0x3d8] sm:$0xff]
    %v638 = vld [vmem:[#allocation4 + $0x3e0] sm:$0xff]
    %v639 = vld [vmem:[#allocation4 + $0x3e8] sm:$0xff]
    %v640 = vld [vmem:[#allocation4 + $0x3f0] sm:$0xff]
    %v641 = vld [vmem:[#allocation4 + $0x3f8] sm:$0xff]
    %v642 = vld [vmem:[%s5] sm:$0xff]
    %v644 = vlaneseq
    %v645 = vshrl.u32 %v644, 7
    %v646 = vsub.s32 0, %v645
    %v647 = vrot.slane %v642, %v646
    %v648 = vlaneseq
    %v649 = vshrl.u32 %v648, 7
    %v650 = vsub.s32 1, %v649
    %v651 = vrot.slane %v642, %v650
    %v652 = vlaneseq
    %v653 = vshrl.u32 %v652, 7
    %v654 = vsub.s32 2, %v653
    %v655 = vrot.slane %v642, %v654
    %v656 = vlaneseq
    %v657 = vshrl.u32 %v656, 7
    %v658 = vsub.s32 3, %v657
    %v659 = vrot.slane %v642, %v658
    %v660 = vlaneseq
    %v661 = vshrl.u32 %v660, 7
    %v662 = vsub.s32 4, %v661
    %v663 = vrot.slane %v642, %v662
    %v664 = vlaneseq
    %v665 = vshrl.u32 %v664, 7
    %v666 = vsub.s32 5, %v665
    %v667 = vrot.slane %v642, %v666
    %v668 = vlaneseq
    %v669 = vshrl.u32 %v668, 7
    %v670 = vsub.s32 6, %v669
    %v671 = vrot.slane %v642, %v670
    %v672 = vlaneseq
    %v673 = vshrl.u32 %v672, 7
    %v674 = vsub.s32 7, %v673
    %v675 = vrot.slane %v642, %v674
    %684 = vmatprep.subr.mxu0 %v635
    %685 = vmatpush1.msra.mxu0 %v634
    %686 = vmatprep.subr.mxu0 %v627
    %687 = vmatpush1.msra.mxu0 %v626
    %688 = vmatprep.subr.mxu0 %v619
    %689 = vmatpush1.msra.mxu0 %v618
    %690 = vmatprep.subr.mxu0 %v611
    %691 = vmatpush1.msra.mxu0 %v610
    %692 = vmatprep.subr.mxu0 %v603
    %693 = vmatpush1.msra.mxu0 %v602
    %694 = vmatprep.subr.mxu0 %v595
    %695 = vmatpush1.msra.mxu0 %v594
    %696 = vmatprep.subr.mxu0 %v587
    %697 = vmatpush1.msra.mxu0 %v586
    %698 = vmatprep.subr.mxu0 %v579
    %699 = vmatpush1.msra.mxu0 %v578
    %700 = vmatprep.subr.mxu0 %v571
    %701 = vmatpush1.msra.mxu0 %v570
    %702 = vmatprep.subr.mxu0 %v563
    %703 = vmatpush1.msra.mxu0 %v562
    %704 = vmatprep.subr.mxu0 %v555
    %705 = vmatpush1.msra.mxu0 %v554
    %706 = vmatprep.subr.mxu0 %v547
    %707 = vmatpush1.msra.mxu0 %v546
    %708 = vmatprep.subr.mxu0 %v539
    %709 = vmatpush1.msra.mxu0 %v538
    %710 = vmatprep.subr.mxu0 %v531
    %711 = vmatpush1.msra.mxu0 %v530
    %712 = vmatprep.subr.mxu0 %v523
    %713 = vmatpush1.msra.mxu0 %v522
    %714 = vmatprep.subr.mxu0 %v515
    %715 = vmatpush1.msra.mxu0 %v514
    %716 = vmatprep.subr.mxu0 0.0
    %717 = vmatpush2.msra.mxu0 0.0
    %718 = vmatprep.subr.mxu0 0.0
    %719 = vmatpush2.msra.mxu0 0.0
    %720 = vmatprep.subr.mxu0 0.0
    %721 = vmatpush2.msra.mxu0 0.0
    %722 = vmatprep.subr.mxu0 0.0
    %723 = vmatpush2.msra.mxu0 0.0
    %724 = vmatprep.subr.mxu0 0.0
    %725 = vmatpush2.msra.mxu0 0.0
    %726 = vmatprep.subr.mxu0 0.0
    %727 = vmatpush2.msra.mxu0 0.0
    %728 = vmatprep.subr.mxu0 0.0
    %729 = vmatpush2.msra.mxu0 0.0
    %730 = vmatprep.subr.mxu0 0.0
    %731 = vmatpush2.msra.mxu0 0.0
    %732 = vmatprep.subr.mxu0 0.0
    %733 = vmatpush2.msra.mxu0 0.0
    %734 = vmatprep.subr.mxu0 0.0
    %735 = vmatpush2.msra.mxu0 0.0
    %736 = vmatprep.subr.mxu0 0.0
    %737 = vmatpush2.msra.mxu0 0.0
    %738 = vmatprep.subr.mxu0 0.0
    %739 = vmatpush2.msra.mxu0 0.0
    %740 = vmatprep.subr.mxu0 0.0
    %741 = vmatpush2.msra.mxu0 0.0
    %742 = vmatprep.subr.mxu0 0.0
    %743 = vmatpush2.msra.mxu0 0.0
    %744 = vmatprep.subr.mxu0 0.0
    %745 = vmatpush2.msra.mxu0 0.0
    %746 = vmatprep.subr.mxu0 0.0
    %747 = vmatpush2.msra.mxu0 0.0
    %748 = vmatprep.mubr.f32.mxu0 0.0
    %749 = vmatmul.mubr.f32.gmra.mxu0 %v511
    %v750 = vpop.f32.mrf.mxu0
    %v751 = vadd.f32 %v647, %v750
    %v752 = vpop.f32.mrf.mxu0
    %v753 = vadd.f32 %v651, %v752
    %754 = vdwg.mxu0
    %755 = vmatprep.subr.mxu0 %v637
    %756 = vmatpush1.msra.mxu0 %v636
    %757 = vmatprep.subr.mxu0 %v629
    %758 = vmatpush1.msra.mxu0 %v628
    %759 = vmatprep.subr.mxu0 %v621
    %760 = vmatpush1.msra.mxu0 %v620
    %761 = vmatprep.subr.mxu0 %v613
    %762 = vmatpush1.msra.mxu0 %v612
    %763 = vmatprep.subr.mxu0 %v605
    %764 = vmatpush1.msra.mxu0 %v604
    %765 = vmatprep.subr.mxu0 %v597
    %766 = vmatpush1.msra.mxu0 %v596
    %767 = vmatprep.subr.mxu0 %v589
    %768 = vmatpush1.msra.mxu0 %v588
    %769 = vmatprep.subr.mxu0 %v581
    %770 = vmatpush1.msra.mxu0 %v580
    %771 = vmatprep.subr.mxu0 %v573
    %772 = vmatpush1.msra.mxu0 %v572
    %773 = vmatprep.subr.mxu0 %v565
    %774 = vmatpush1.msra.mxu0 %v564
    %775 = vmatprep.subr.mxu0 %v557
    %776 = vmatpush1.msra.mxu0 %v556
    %777 = vmatprep.subr.mxu0 %v549
    %778 = vmatpush1.msra.mxu0 %v548
    %779 = vmatprep.subr.mxu0 %v541
    %780 = vmatpush1.msra.mxu0 %v540
    %781 = vmatprep.subr.mxu0 %v533
    %782 = vmatpush1.msra.mxu0 %v532
    %783 = vmatprep.subr.mxu0 %v525
    %784 = vmatpush1.msra.mxu0 %v524
    %785 = vmatprep.subr.mxu0 %v517
    %786 = vmatpush1.msra.mxu0 %v516
    %787 = vmatprep.subr.mxu0 0.0
    %788 = vmatpush2.msra.mxu0 0.0
    %789 = vmatprep.subr.mxu0 0.0
    %790 = vmatpush2.msra.mxu0 0.0
    %791 = vmatprep.subr.mxu0 0.0
    %792 = vmatpush2.msra.mxu0 0.0
    %793 = vmatprep.subr.mxu0 0.0
    %794 = vmatpush2.msra.mxu0 0.0
    %795 = vmatprep.subr.mxu0 0.0
    %796 = vmatpush2.msra.mxu0 0.0
    %797 = vmatprep.subr.mxu0 0.0
    %798 = vmatpush2.msra.mxu0 0.0
    %799 = vmatprep.subr.mxu0 0.0
    %800 = vmatpush2.msra.mxu0 0.0
    %801 = vmatprep.subr.mxu0 0.0
    %802 = vmatpush2.msra.mxu0 0.0
    %803 = vmatprep.subr.mxu0 0.0
    %804 = vmatpush2.msra.mxu0 0.0
    %805 = vmatprep.subr.mxu0 0.0
    %806 = vmatpush2.msra.mxu0 0.0
    %807 = vmatprep.subr.mxu0 0.0
    %808 = vmatpush2.msra.mxu0 0.0
    %809 = vmatprep.subr.mxu0 0.0
    %810 = vmatpush2.msra.mxu0 0.0
    %811 = vmatprep.subr.mxu0 0.0
    %812 = vmatpush2.msra.mxu0 0.0
    %813 = vmatprep.subr.mxu0 0.0
    %814 = vmatpush2.msra.mxu0 0.0
    %815 = vmatprep.subr.mxu0 0.0
    %816 = vmatpush2.msra.mxu0 0.0
    %817 = vmatprep.subr.mxu0 0.0
    %818 = vmatpush2.msra.mxu0 0.0
    %819 = vmatprep.mubr.f32.mxu0 0.0
    %820 = vmatmul.mubr.f32.gmra.mxu0 %v511
    %v821 = vpop.f32.mrf.mxu0
    %v822 = vadd.f32 %v655, %v821
    %v823 = vpop.f32.mrf.mxu0
    %v824 = vadd.f32 %v659, %v823
    %825 = vdwg.mxu0
    %826 = vmatprep.subr.mxu0 %v639
    %827 = vmatpush1.msra.mxu0 %v638
    %828 = vmatprep.subr.mxu0 %v631
    %829 = vmatpush1.msra.mxu0 %v630
    %830 = vmatprep.subr.mxu0 %v623
    %831 = vmatpush1.msra.mxu0 %v622
    %832 = vmatprep.subr.mxu0 %v615
    %833 = vmatpush1.msra.mxu0 %v614
    %834 = vmatprep.subr.mxu0 %v607
    %835 = vmatpush1.msra.mxu0 %v606
    %836 = vmatprep.subr.mxu0 %v599
    %837 = vmatpush1.msra.mxu0 %v598
    %838 = vmatprep.subr.mxu0 %v591
    %839 = vmatpush1.msra.mxu0 %v590
    %840 = vmatprep.subr.mxu0 %v583
    %841 = vmatpush1.msra.mxu0 %v582
    %842 = vmatprep.subr.mxu0 %v575
    %843 = vmatpush1.msra.mxu0 %v574
    %844 = vmatprep.subr.mxu0 %v567
    %845 = vmatpush1.msra.mxu0 %v566
    %846 = vmatprep.subr.mxu0 %v559
    %847 = vmatpush1.msra.mxu0 %v558
    %848 = vmatprep.subr.mxu0 %v551
    %849 = vmatpush1.msra.mxu0 %v550
    %850 = vmatprep.subr.mxu0 %v543
    %851 = vmatpush1.msra.mxu0 %v542
    %852 = vmatprep.subr.mxu0 %v535
    %853 = vmatpush1.msra.mxu0 %v534
    %854 = vmatprep.subr.mxu0 %v527
    %855 = vmatpush1.msra.mxu0 %v526
    %856 = vmatprep.subr.mxu0 %v519
    %857 = vmatpush1.msra.mxu0 %v518
    %858 = vmatprep.subr.mxu0 0.0
    %859 = vmatpush2.msra.mxu0 0.0
    %860 = vmatprep.subr.mxu0 0.0
    %861 = vmatpush2.msra.mxu0 0.0
    %862 = vmatprep.subr.mxu0 0.0
    %863 = vmatpush2.msra.mxu0 0.0
    %864 = vmatprep.subr.mxu0 0.0
    %865 = vmatpush2.msra.mxu0 0.0
    %866 = vmatprep.subr.mxu0 0.0
    %867 = vmatpush2.msra.mxu0 0.0
    %868 = vmatprep.subr.mxu0 0.0
    %869 = vmatpush2.msra.mxu0 0.0
    %870 = vmatprep.subr.mxu0 0.0
    %871 = vmatpush2.msra.mxu0 0.0
    %872 = vmatprep.subr.mxu0 0.0
    %873 = vmatpush2.msra.mxu0 0.0
    %874 = vmatprep.subr.mxu0 0.0
    %875 = vmatpush2.msra.mxu0 0.0
    %876 = vmatprep.subr.mxu0 0.0
    %877 = vmatpush2.msra.mxu0 0.0
    %878 = vmatprep.subr.mxu0 0.0
    %879 = vmatpush2.msra.mxu0 0.0
    %880 = vmatprep.subr.mxu0 0.0
    %881 = vmatpush2.msra.mxu0 0.0
    %882 = vmatprep.subr.mxu0 0.0
    %883 = vmatpush2.msra.mxu0 0.0
    %884 = vmatprep.subr.mxu0 0.0
    %885 = vmatpush2.msra.mxu0 0.0
    %886 = vmatprep.subr.mxu0 0.0
    %887 = vmatpush2.msra.mxu0 0.0
    %888 = vmatprep.subr.mxu0 0.0
    %889 = vmatpush2.msra.mxu0 0.0
    %890 = vmatprep.mubr.f32.mxu0 0.0
    %891 = vmatmul.mubr.f32.gmra.mxu0 %v511
    %v892 = vpop.f32.mrf.mxu0
    %v893 = vadd.f32 %v663, %v892
    %v894 = vpop.f32.mrf.mxu0
    %v895 = vadd.f32 %v667, %v894
    %896 = vdwg.mxu0
    %897 = vmatprep.subr.mxu0 %v641
    %898 = vmatpush1.msra.mxu0 %v640
    %899 = vmatprep.subr.mxu0 %v633
    %900 = vmatpush1.msra.mxu0 %v632
    %901 = vmatprep.subr.mxu0 %v625
    %902 = vmatpush1.msra.mxu0 %v624
    %903 = vmatprep.subr.mxu0 %v617
    %904 = vmatpush1.msra.mxu0 %v616
    %905 = vmatprep.subr.mxu0 %v609
    %906 = vmatpush1.msra.mxu0 %v608
    %907 = vmatprep.subr.mxu0 %v601
    %908 = vmatpush1.msra.mxu0 %v600
    %909 = vmatprep.subr.mxu0 %v593
    %910 = vmatpush1.msra.mxu0 %v592
    %911 = vmatprep.subr.mxu0 %v585
    %912 = vmatpush1.msra.mxu0 %v584
    %913 = vmatprep.subr.mxu0 %v577
    %914 = vmatpush1.msra.mxu0 %v576
    %915 = vmatprep.subr.mxu0 %v569
    %916 = vmatpush1.msra.mxu0 %v568
    %917 = vmatprep.subr.mxu0 %v561
    %918 = vmatpush1.msra.mxu0 %v560
    %919 = vmatprep.subr.mxu0 %v553
    %920 = vmatpush1.msra.mxu0 %v552
    %921 = vmatprep.subr.mxu0 %v545
    %922 = vmatpush1.msra.mxu0 %v544
    %923 = vmatprep.subr.mxu0 %v537
    %924 = vmatpush1.msra.mxu0 %v536
    %925 = vmatprep.subr.mxu0 %v529
    %926 = vmatpush1.msra.mxu0 %v528
    %927 = vmatprep.subr.mxu0 %v521
    %928 = vmatpush1.msra.mxu0 %v520
    %929 = vmatprep.subr.mxu0 0.0
    %930 = vmatpush2.msra.mxu0 0.0
    %931 = vmatprep.subr.mxu0 0.0
    %932 = vmatpush2.msra.mxu0 0.0
    %933 = vmatprep.subr.mxu0 0.0
    %934 = vmatpush2.msra.mxu0 0.0
    %935 = vmatprep.subr.mxu0 0.0
    %936 = vmatpush2.msra.mxu0 0.0
    %937 = vmatprep.subr.mxu0 0.0
    %938 = vmatpush2.msra.mxu0 0.0
    %939 = vmatprep.subr.mxu0 0.0
    %940 = vmatpush2.msra.mxu0 0.0
    %941 = vmatprep.subr.mxu0 0.0
    %942 = vmatpush2.msra.mxu0 0.0
    %943 = vmatprep.subr.mxu0 0.0
    %944 = vmatpush2.msra.mxu0 0.0
    %945 = vmatprep.subr.mxu0 0.0
    %946 = vmatpush2.msra.mxu0 0.0
    %947 = vmatprep.subr.mxu0 0.0
    %948 = vmatpush2.msra.mxu0 0.0
    %949 = vmatprep.subr.mxu0 0.0
    %950 = vmatpush2.msra.mxu0 0.0
    %951 = vmatprep.subr.mxu0 0.0
    %952 = vmatpush2.msra.mxu0 0.0
    %953 = vmatprep.subr.mxu0 0.0
    %954 = vmatpush2.msra.mxu0 0.0
    %955 = vmatprep.subr.mxu0 0.0
    %956 = vmatpush2.msra.mxu0 0.0
    %957 = vmatprep.subr.mxu0 0.0
    %958 = vmatpush2.msra.mxu0 0.0
    %959 = vmatprep.subr.mxu0 0.0
    %960 = vmatpush2.msra.mxu0 0.0
    %961 = vmatprep.mubr.f32.mxu0 0.0
    %962 = vmatmul.mubr.f32.gmra.mxu0 %v511
    %v963 = vpop.f32.mrf.mxu0
    %v964 = vadd.f32 %v671, %v963
    %v965 = vpop.f32.mrf.mxu0
    %v966 = vadd.f32 %v675, %v965
    %967 = vdwg.mxu0
    %v976 = vcombine.low %v751, %v753
    %v977 = vcombine.low %v822, %v824
    %v979 = vunpack.c.l.s4 1983009808
    %v980 = vunpack.c.0.s8 %v979
    %v981 = vlaneseq
    %v982 = vshrl.u32 %v981, 7
    %v983 = vsub.s32 %v980, %v982
    %v984 = vrot.slane %v976, %v983
    %v986 = vunpack.c.l.s4 1983009808
    %v987 = vunpack.c.0.s8 %v986
    %v988 = vlaneseq
    %v989 = vshrl.u32 %v988, 7
    %v990 = vsub.s32 %v987, %v989
    %v991 = vrot.slane %v977, %v990
    %v992 = vcombine.low %v984, %v991
    %v993 = vcombine.low %v893, %v895
    %v994 = vcombine.low %v964, %v966
    %v996 = vunpack.c.l.s4 1983009808
    %v997 = vunpack.c.0.s8 %v996
    %v998 = vlaneseq
    %v999 = vshrl.u32 %v998, 7
    %v1000 = vsub.s32 %v997, %v999
    %v1001 = vrot.slane %v993, %v1000
    %v1003 = vunpack.c.l.s4 1983009808
    %v1004 = vunpack.c.0.s8 %v1003
    %v1005 = vlaneseq
    %v1006 = vshrl.u32 %v1005, 7
    %v1007 = vsub.s32 %v1004, %v1006
    %v1008 = vrot.slane %v994, %v1007
    %v1009 = vcombine.low %v1001, %v1008
    %1012 = vst [vmem:[%s6] sm:$0xff] %v992
    %1013 = vst [vmem:[%s6 + $0x8] sm:$0xff] %v1009
    %v1014 = vld [vmem:[%s1] sm:$0x3]
    %v1015 = vunpack.c.0.s8 %v1014
    %v1016 = vmax.f32 %v751, %v822
    %v1017 = vmax.f32 %v753, %v824
    %v1018 = vmax.f32 %v1016, %v893
    %v1019 = vmax.f32 %v1017, %v895
    %v1020 = vmax.f32 %v1018, %v964
    %v1021 = vmax.f32 %v1019, %v966
    %v1022 = vsub.f32 %v751, %v1020
    %v1023 = vsub.f32 %v753, %v1021
    %v1024 = vmul.f32 %v1022, 1.442695
    %v1025 = vpow.pop %v1024
    %v1026 = vmul.f32 %v1023, 1.442695
    %v1027 = vpow.pop %v1026
    %v1028 = vadd.f32 %v1025, 0.0
    %v1029 = vadd.f32 %v1027, 0.0
    %v1030 = vsub.f32 %v822, %v1020
    %v1031 = vsub.f32 %v824, %v1021
    %v1032 = vmul.f32 %v1030, 1.442695
    %v1033 = vpow.pop %v1032
    %v1034 = vmul.f32 %v1031, 1.442695
    %v1035 = vpow.pop %v1034
    %v1036 = vadd.f32 %v1028, %v1033
    %v1037 = vadd.f32 %v1029, %v1035
    %v1038 = vsub.f32 %v893, %v1020
    %v1039 = vsub.f32 %v895, %v1021
    %v1040 = vmul.f32 %v1038, 1.442695
    %v1041 = vpow.pop %v1040
    %v1042 = vmul.f32 %v1039, 1.442695
    %v1043 = vpow.pop %v1042
    %v1044 = vadd.f32 %v1036, %v1041
    %v1045 = vadd.f32 %v1037, %v1043
    %v1046 = vsub.f32 %v964, %v1020
    %v1047 = vsub.f32 %v966, %v1021
    %v1048 = vmul.f32 %v1046, 1.442695
    %v1049 = vpow.pop %v1048
    %v1050 = vmul.f32 %v1047, 1.442695
    %v1051 = vpow.pop %v1050
    %v1052 = vadd.f32 %v1044, %v1049
    %v1053 = vadd.f32 %v1045, %v1051
    %v1054 = vlog2.pop %v1052
    %v1055 = vmul.f32 %v1054, 0.6931472
    %v1056 = vlog2.pop %v1053
    %v1057 = vmul.f32 %v1056, 0.6931472
    %v1058 = vadd.f32 %v1020, %v1055
    %v1059 = vadd.f32 %v1021, %v1057
    %vm1060 = vcmp.eq.s32.totalorder %v1015, 0
    %v1062 = vsel %vm1060, %v976, 0.0
    %v1063 = vadd.f32 %v1062, 0.0
    %vm1064 = vcmp.eq.s32.totalorder %v1015, 1
    %v1066 = vsel %vm1064, %v977, 0.0
    %v1067 = vadd.f32 %v1063, %v1066
    %vm1068 = vcmp.eq.s32.totalorder %v1015, 2
    %v1070 = vsel %vm1068, %v993, 0.0
    %v1071 = vadd.f32 %v1067, %v1070
    %vm1072 = vcmp.eq.s32.totalorder %v1015, 3
    %v1074 = vsel %vm1072, %v994, 0.0
    %v1075 = vadd.f32 %v1071, %v1074
    %v1077 = vcombine.high %v1075, %v1075
    %v1079 = vsub.f32 %v1058, %v1075
    %v1080 = vsub.f32 %v1059, %v1077
    %vm1081 = vcmask 1041408
    %v1082 = vsel %vm1081, %v1079, 0.0
    %v1083 = vsel %vm1081, %v1080, 0.0
    %v1084 = vadd.f32 %v1082, %v1083
    %1085 = vadd.xlane.f32.xlu0 %v1084
    %v1086 = vpop.xlane.xlu0 %1085
    %v1087 = vrot.slane %v1086, 4
    %v1088 = vadd.f32 %v1086, %v1087
    %v1089 = vrot.slane %v1088, 2
    %v1090 = vadd.f32 %v1088, %v1089
    %v1091 = vrot.slane %v1090, 1
    %v1092 = vadd.f32 %v1090, %v1091
    %s1093 = vtos %v1092
    %v1094 = vlaneseq
    %v1095 = vshrl.u32 %v1094, 7
    %v1096 = vlaneseq
    %v1097 = vand.u32 %v1096, 127
    %vm1098 = vcmp.eq.s32.totalorder %v1095, 0
    %vm1099 = vcmp.eq.s32.totalorder %v1097, 0
    %vm1100 = vmand %vm1098, %vm1099
    %v1101 = vstv %s1093
    %v1102 = vsel %vm1100, %v1101, 0.0
    %1103 = vst [vmem:[%s7] sm:$0xff] %v1102
    // Predicated region
    $region34: #{autoencoder_forward.1} parent=1 // pred_check
      _
    $region35: #{autoencoder_forward.1} parent=1 // pred_check_branch
      %1105 = sbr.rel (0) target = $region37
    $region36: #{autoencoder_forward.1} parent=1 // pred_region
      _
    $region37: #{autoencoder_forward.1} parent=1 // pred_fallthru
      _
    // Predicated region
    $region38: #{autoencoder_forward.1} parent=1 // pred_check
      _
    $region39: #{autoencoder_forward.1} parent=1 // pred_check_branch
      %1107 = sbr.rel (0) target = $region41
    $region40: #{autoencoder_forward.1} parent=1 // pred_region
      _
    $region41: #{autoencoder_forward.1} parent=1 // pred_fallthru
      _
    // Predicated region
    $region42: #{autoencoder_forward.1} parent=1 // pred_check
      _
    $region43: #{autoencoder_forward.1} parent=1 // pred_check_branch
      %1109 = sbr.rel (0) target = $region45
    $region44: #{autoencoder_forward.1} parent=1 // pred_region
      _
    $region45: #{autoencoder_forward.1} parent=1 // pred_fallthru
      _
    // Predicated region
    $region46: #{autoencoder_forward.1} parent=1 // pred_check
      _
    $region47: #{autoencoder_forward.1} parent=1 // pred_check_branch
      %1111 = sbr.rel (0) target = $region49
    $region48: #{autoencoder_forward.1} parent=1 // pred_region
      _
    $region49: #{autoencoder_forward.1} parent=1 // pred_fallthru
      _
    %1112 = vsyncpa [#allocation3], 1
    %1113 = vsyncpa [#allocation5], 1

</llo_original>
